<compile_context>
chip_gen: v7x
topology: tpu7x:2x2x1
jax: 0.10.0
libtpu: 0.0.40
codegen_flags: <defaults>
</compile_context>

<pallas_src>
import jax
import jax.numpy as jnp
from jax.experimental import pallas as pl
from jax.experimental.pallas import tpu as pltpu

HIDDEN = 256                          # projector output dim (nn.Linear(..., 256))
N_TASKS = 3                           # [mortality, los, mechanical_ventilation]
N_MODS = 3                            # demo, lab, text
OUT_COLS = (N_MODS + 1) * N_TASKS     # 9 raw logits + 3 fused logits = 12
OUT_PAD = 128                         # lane-dense packed output width


def _round_up(x, m):
    return (x + m - 1) // m * m


def _fusion_kernel(d_ref, l_ref, t_ref,
                   wd_ref, bd_ref, wl_ref, bl_ref, wt_ref, bt_ref,
                   wc_ref, bc_ref, out_ref):
    f32 = jnp.float32
    bf16 = jnp.bfloat16
    # per-modality projectors: relu(x @ W + b), bf16 operands, f32 accumulation
    pd = jnp.maximum(
        jnp.dot(d_ref[...], wd_ref[...], preferred_element_type=f32)
        + bd_ref[...], 0.0)
    pb = jnp.maximum(
        jnp.dot(l_ref[...], wl_ref[...], preferred_element_type=f32)
        + bl_ref[...], 0.0)
    pt = jnp.maximum(
        jnp.dot(t_ref[...], wt_ref[...], preferred_element_type=f32)
        + bt_ref[...], 0.0)
    # fused classifiers + EDDI-weighted fusion: one K=768 matmul expressed as
    # three K=256 row-block dots (identical MXU passes, no in-kernel concat).
    pd = pd.astype(bf16)
    pb = pb.astype(bf16)
    pt = pt.astype(bf16)
    out_ref[...] = (
        jnp.dot(pd, wc_ref[0:HIDDEN, :], preferred_element_type=f32)
        + jnp.dot(pb, wc_ref[HIDDEN:2 * HIDDEN, :], preferred_element_type=f32)
        + jnp.dot(pt, wc_ref[2 * HIDDEN:3 * HIDDEN, :], preferred_element_type=f32)
        + bc_ref[...])


def _pack_weights(params, mod_w):
    """Host-side packing: per-modality projector weights in bf16, one fused
    classifier weight whose columns are [raw_demo | raw_lab | raw_text |
    fused | pad]; modality weights are folded into the fused columns."""
    bf16 = jnp.bfloat16
    f32 = jnp.float32

    wd = params["w_demo"].astype(bf16)
    wl = params["w_lab"].astype(bf16)
    wt = params["w_text"].astype(bf16)
    bd = params["b_demo"].astype(f32)
    bl = params["b_lab"].astype(f32)
    bt = params["b_text"].astype(f32)

    wc = jnp.zeros((N_MODS * HIDDEN, OUT_PAD), f32)
    # raw per-modality task logits (block diagonal)
    wc = wc.at[0:HIDDEN, 0:N_TASKS].set(params["wc_demo"])
    wc = wc.at[HIDDEN:2 * HIDDEN, N_TASKS:2 * N_TASKS].set(params["wc_lab"])
    wc = wc.at[2 * HIDDEN:3 * HIDDEN, 2 * N_TASKS:3 * N_TASKS].set(params["wc_text"])
    # fused logits: fold modality weight w[m, task] into classifier columns
    wc = wc.at[0:HIDDEN, 3 * N_TASKS:4 * N_TASKS].set(
        params["wc_demo"] * mod_w[0:1, :])
    wc = wc.at[HIDDEN:2 * HIDDEN, 3 * N_TASKS:4 * N_TASKS].set(
        params["wc_lab"] * mod_w[1:2, :])
    wc = wc.at[2 * HIDDEN:3 * HIDDEN, 3 * N_TASKS:4 * N_TASKS].set(
        params["wc_text"] * mod_w[2:3, :])
    wc = wc.astype(bf16)

    bc = jnp.zeros((1, OUT_PAD), f32)
    bc = bc.at[:, 0:N_TASKS].set(params["bc_demo"])
    bc = bc.at[:, N_TASKS:2 * N_TASKS].set(params["bc_lab"])
    bc = bc.at[:, 2 * N_TASKS:3 * N_TASKS].set(params["bc_text"])
    bc = bc.at[:, 3 * N_TASKS:4 * N_TASKS].set(
        params["bc_demo"] * mod_w[0:1, :]
        + params["bc_lab"] * mod_w[1:2, :]
        + params["bc_text"] * mod_w[2:3, :])
    return wd, bd, wl, bl, wt, bt, wc, bc


def _choose_batch_tile(B, batch_tile):
    """Sublane-aligned batch tile. Moderate B: split into >=2 tiles so both
    v7x TensorCores get work. Large B: cap at batch_tile (amortize per-step
    overhead on single-TC v5e/v6e)."""
    if B > 2 * batch_tile:
        return batch_tile
    half = _round_up(-(-B // 2), 8)
    return half if half < B else B     # full-array block when B is tiny


def multimodal_fusion_forward(demo_emb, lab_emb, text_emb, params, mod_weights,
                              *, batch_tile=1024):
    """Projection + per-modality classification + EDDI-weighted fusion as one
    batch-tiled Pallas kernel. Returns (fused, logit_demo, logit_lab,
    logit_text), each [B, N_TASKS] in f32."""
    B = demo_emb.shape[0]
    h_demo, h_lab, h_text = demo_emb.shape[1], lab_emb.shape[1], text_emb.shape[1]

    # activation operands in bf16 (MXU-native, halves operand DMA bytes);
    # in a full pipeline the upstream encoders would emit bf16 directly.
    d = demo_emb.astype(jnp.bfloat16)
    l = lab_emb.astype(jnp.bfloat16)
    t = text_emb.astype(jnp.bfloat16)

    tb = _choose_batch_tile(B, batch_tile)
    grid = (pl.cdiv(B, tb),)   # partial last tile handled by Pallas masking

    wd, bd, wl, bl, wt, bt, wc, bc = _pack_weights(params, mod_weights)

    packed = pl.pallas_call(
        _fusion_kernel,
        grid=grid,
        in_specs=[
            pl.BlockSpec((tb, h_demo), lambda i: (i, 0)),               # demo emb
            pl.BlockSpec((tb, h_lab), lambda i: (i, 0)),                # lab emb
            pl.BlockSpec((tb, h_text), lambda i: (i, 0)),               # text emb
            pl.BlockSpec((h_demo, HIDDEN), lambda i: (0, 0)),           # resident W_demo
            pl.BlockSpec((1, HIDDEN), lambda i: (0, 0)),                # resident b_demo
            pl.BlockSpec((h_lab, HIDDEN), lambda i: (0, 0)),            # resident W_lab
            pl.BlockSpec((1, HIDDEN), lambda i: (0, 0)),                # resident b_lab
            pl.BlockSpec((h_text, HIDDEN), lambda i: (0, 0)),           # resident W_text
            pl.BlockSpec((1, HIDDEN), lambda i: (0, 0)),                # resident b_text
            pl.BlockSpec((N_MODS * HIDDEN, OUT_PAD), lambda i: (0, 0)),  # resident W_cls
            pl.BlockSpec((1, OUT_PAD), lambda i: (0, 0)),               # resident b_cls
        ],
        out_specs=pl.BlockSpec((tb, OUT_PAD), lambda i: (i, 0)),
        out_shape=jax.ShapeDtypeStruct((B, OUT_PAD), jnp.float32),
        compiler_params=pltpu.CompilerParams(
            dimension_semantics=("parallel",),        # batch tiles across TCs
            vmem_limit_bytes=32 * 1024 * 1024),
    )(d, l, t, wd, bd, wl, bl, wt, bt, wc, bc)

    l_demo = packed[:, 0:N_TASKS]
    l_lab = packed[:, N_TASKS:2 * N_TASKS]
    l_text = packed[:, 2 * N_TASKS:3 * N_TASKS]
    fused = packed[:, 3 * N_TASKS:4 * N_TASKS]
    return fused, l_demo, l_lab, l_text


def _init_params(key, h_demo, h_lab, h_text):
    ks = jax.random.split(key, 12)
    s = 0.02

    def lin(k, fan_in, fan_out):
        return s * jax.random.normal(k, (fan_in, fan_out), jnp.float32)

    return {
        "w_demo": lin(ks[0], h_demo, HIDDEN),
        "b_demo": s * jax.random.normal(ks[1], (1, HIDDEN), jnp.float32),
        "w_lab": lin(ks[2], h_lab, HIDDEN),
        "b_lab": s * jax.random.normal(ks[3], (1, HIDDEN), jnp.float32),
        "w_text": lin(ks[4], h_text, HIDDEN),
        "b_text": s * jax.random.normal(ks[5], (1, HIDDEN), jnp.float32),
        # per-modality classifiers, 3 tasks stacked along output axis:
        # col 0 = mortality, 1 = los, 2 = mechanical_ventilation
        "wc_demo": lin(ks[6], HIDDEN, N_TASKS),
        "bc_demo": s * jax.random.normal(ks[7], (1, N_TASKS), jnp.float32),
        "wc_lab": lin(ks[8], HIDDEN, N_TASKS),
        "bc_lab": s * jax.random.normal(ks[9], (1, N_TASKS), jnp.float32),
        "wc_text": lin(ks[10], HIDDEN, N_TASKS),
        "bc_text": s * jax.random.normal(ks[11], (1, N_TASKS), jnp.float32),
    }


def _modality_weights(beta, eddi_vals=None, old_weights=None):
    """Host-side reproduction of the weight update in compute_weighted_logit.
    With y_true=None the reference sets all EDDI values to 0."""
    if eddi_vals is None:
        eddi_vals = (0.0, 0.0, 0.0)
    e_demo, e_lab, e_text = eddi_vals
    e_max = max(e_demo, e_lab, e_text)
    base = old_weights if old_weights is not None else (0.33, 0.33, 0.33)
    w = [base[0] + beta * (e_max - e_demo),
         base[1] + beta * (e_max - e_lab),
         base[2] + beta * (e_max - e_text)]
    # rows = modality (demo, lab, text); columns = tasks
    return jnp.asarray([[w[0]] * N_TASKS,
                        [w[1]] * N_TASKS,
                        [w[2]] * N_TASKS], dtype=jnp.float32)


def _reference(demo_emb, lab_emb, text_emb, params, mod_w):
    relu = lambda x: jnp.maximum(x, 0.0)
    dp = relu(demo_emb @ params["w_demo"] + params["b_demo"])
    lp = relu(lab_emb @ params["w_lab"] + params["b_lab"])
    tp = relu(text_emb @ params["w_text"] + params["b_text"])
    ld = dp @ params["wc_demo"] + params["bc_demo"]
    ll = lp @ params["wc_lab"] + params["bc_lab"]
    lt = tp @ params["wc_text"] + params["bc_text"]
    fused = ld * mod_w[0:1, :] + ll * mod_w[1:2, :] + lt * mod_w[2:3, :]
    return fused, ld, ll, lt


def _run_and_check(B, h_demo, h_lab, h_text, beta, batch_tile, seed):
    key = jax.random.PRNGKey(seed)
    k_in, k_par = jax.random.split(key)
    ki = jax.random.split(k_in, 3)
    demo_emb = jax.random.normal(ki[0], (B, h_demo), jnp.float32)
    lab_emb = jax.random.normal(ki[1], (B, h_lab), jnp.float32)
    text_emb = jax.random.normal(ki[2], (B, h_text), jnp.float32)

    params = _init_params(k_par, h_demo, h_lab, h_text)
    mod_w = _modality_weights(beta)  # no-label path -> all 0.33

    fused, l_demo, l_lab, l_text = multimodal_fusion_forward(
        demo_emb, lab_emb, text_emb, params, mod_w, batch_tile=batch_tile)
    jax.block_until_ready(fused)

    ref_fused, ref_ld, ref_ll, ref_lt = _reference(
        demo_emb, lab_emb, text_emb, params, mod_w)
    # bf16 operands (f32 accumulation) -> loosened tolerance vs f32 reference
    atol, rtol = 3e-3, 3e-2
    assert jnp.allclose(fused, ref_fused, atol=atol, rtol=rtol)
    assert jnp.allclose(l_demo, ref_ld, atol=atol, rtol=rtol)
    assert jnp.allclose(l_lab, ref_ll, atol=atol, rtol=rtol)
    assert jnp.allclose(l_text, ref_lt, atol=atol, rtol=rtol)
    return fused, l_demo, l_lab, l_text, mod_w


if __name__ == "__main__":
    BETA = 0.3
    H_DEMO = 32    # behrt_demo.bert.config.hidden_size (small synthetic)
    H_LAB = 32     # behrt_lab.hidden_size
    H_TEXT = 32    # text_embed_size

    # small case matching the module's shapes (single full-array block)
    fused, l_demo, l_lab, l_text, mod_w = _run_and_check(
        B=2, h_demo=H_DEMO, h_lab=H_LAB, h_text=H_TEXT,
        beta=BETA, batch_tile=1024, seed=0)

    # split fused [B,3] back into the three per-task [B,1] logits like the
    # PyTorch forward, plus detail probs (glue, outside the kernel)
    mort_logit = fused[:, 0:1]
    los_logit = fused[:, 1:2]
    mv_logit = fused[:, 2:3]
    details = {
        "probs": (jax.nn.sigmoid(l_demo), jax.nn.sigmoid(l_lab),
                  jax.nn.sigmoid(l_text)),
        "weights": tuple(float(mod_w[m, 0]) for m in range(3)),
        "eddi": (0.0, 0.0, 0.0, 0.0),
    }
    jax.block_until_ready((mort_logit, los_logit, mv_logit))

    # second case: 2-step grid (v7x both-TC path) with a partial last tile
    _run_and_check(B=300, h_demo=H_DEMO, h_lab=H_LAB, h_text=H_TEXT,
                   beta=BETA, batch_tile=1024, seed=1)

    # third case: many-step grid path (tb capped at batch_tile)
    _run_and_check(B=300, h_demo=H_DEMO, h_lab=H_LAB, h_text=H_TEXT,
                   beta=BETA, batch_tile=64, seed=2)

    print("KERNEL_OK")
</pallas_src>

<mosaic_0001>
module attributes {stable_mosaic.version = 11 : i64} {
  func.func @_fusion_kernel(%arg0: i32, %arg1: memref<2x32xbf16, #tpu.memory_space<vmem>>, %arg2: memref<2x32xbf16, #tpu.memory_space<vmem>>, %arg3: memref<2x32xbf16, #tpu.memory_space<vmem>>, %arg4: memref<32x256xbf16, #tpu.memory_space<vmem>>, %arg5: memref<1x256xf32, #tpu.memory_space<vmem>>, %arg6: memref<32x256xbf16, #tpu.memory_space<vmem>>, %arg7: memref<1x256xf32, #tpu.memory_space<vmem>>, %arg8: memref<32x256xbf16, #tpu.memory_space<vmem>>, %arg9: memref<1x256xf32, #tpu.memory_space<vmem>>, %arg10: memref<768x128xbf16, #tpu.memory_space<vmem>>, %arg11: memref<1x128xf32, #tpu.memory_space<vmem>>, %arg12: memref<2x128xf32, #tpu.memory_space<vmem>>) attributes {dimension_semantics = [#tpu.dimension_semantics<parallel>], iteration_bounds = array<i64: 1>, scalar_prefetch = 0 : i64, scratch_operands = 0 : i64, tpu.core_type = #tpu.core_type<tc>, window_params = [{transform_indices = @transform_0, window_bounds = array<i64: 2, 32>}, {transform_indices = @transform_1, window_bounds = array<i64: 2, 32>}, {transform_indices = @transform_2, window_bounds = array<i64: 2, 32>}, {pipeline_mode = #tpu.pipeline_mode<synchronous>, transform_indices = @transform_3, window_bounds = array<i64: 32, 256>}, {pipeline_mode = #tpu.pipeline_mode<synchronous>, transform_indices = @transform_4, window_bounds = array<i64: 1, 256>}, {pipeline_mode = #tpu.pipeline_mode<synchronous>, transform_indices = @transform_5, window_bounds = array<i64: 32, 256>}, {pipeline_mode = #tpu.pipeline_mode<synchronous>, transform_indices = @transform_6, window_bounds = array<i64: 1, 256>}, {pipeline_mode = #tpu.pipeline_mode<synchronous>, transform_indices = @transform_7, window_bounds = array<i64: 32, 256>}, {pipeline_mode = #tpu.pipeline_mode<synchronous>, transform_indices = @transform_8, window_bounds = array<i64: 1, 256>}, {pipeline_mode = #tpu.pipeline_mode<synchronous>, transform_indices = @transform_9, window_bounds = array<i64: 768, 128>}, {pipeline_mode = #tpu.pipeline_mode<synchronous>, transform_indices = @transform_10, window_bounds = array<i64: 1, 128>}, {transform_indices = @transform_11, window_bounds = array<i64: 2, 128>}]} {
    %c0 = arith.constant 0 : index
    %c0_0 = arith.constant 0 : index
    %0 = vector.load %arg1[%c0, %c0_0] : memref<2x32xbf16, #tpu.memory_space<vmem>>, vector<2x32xbf16>
    %c0_1 = arith.constant 0 : index
    %c0_2 = arith.constant 0 : index
    %1 = vector.load %arg4[%c0_1, %c0_2] : memref<32x256xbf16, #tpu.memory_space<vmem>>, vector<32x256xbf16>
    %cst = arith.constant dense<0.000000e+00> : vector<2x256xf32>
    %2 = tpu.matmul %0, %1, %cst {dimension_numbers = #tpu.dot_dimension_numbers<[1], [0], [0], [1], [0, 0, 1, 1], [], []>} : vector<2x32xbf16>, vector<32x256xbf16>, vector<2x256xf32> -> vector<2x256xf32>
    %c0_3 = arith.constant 0 : index
    %c0_4 = arith.constant 0 : index
    %3 = vector.load %arg5[%c0_3, %c0_4] : memref<1x256xf32, #tpu.memory_space<vmem>>, vector<1x256xf32>
    %4 = vector.broadcast %3 : vector<1x256xf32> to vector<2x256xf32>
    %5 = arith.addf %2, %4 : vector<2x256xf32>
    %cst_5 = arith.constant 0.000000e+00 : f32
    %6 = vector.broadcast %cst_5 : f32 to vector<2x256xf32>
    %7 = arith.maximumf %5, %6 : vector<2x256xf32>
    %c0_6 = arith.constant 0 : index
    %c0_7 = arith.constant 0 : index
    %8 = vector.load %arg2[%c0_6, %c0_7] : memref<2x32xbf16, #tpu.memory_space<vmem>>, vector<2x32xbf16>
    %c0_8 = arith.constant 0 : index
    %c0_9 = arith.constant 0 : index
    %9 = vector.load %arg6[%c0_8, %c0_9] : memref<32x256xbf16, #tpu.memory_space<vmem>>, vector<32x256xbf16>
    %cst_10 = arith.constant dense<0.000000e+00> : vector<2x256xf32>
    %10 = tpu.matmul %8, %9, %cst_10 {dimension_numbers = #tpu.dot_dimension_numbers<[1], [0], [0], [1], [0, 0, 1, 1], [], []>} : vector<2x32xbf16>, vector<32x256xbf16>, vector<2x256xf32> -> vector<2x256xf32>
    %c0_11 = arith.constant 0 : index
    %c0_12 = arith.constant 0 : index
    %11 = vector.load %arg7[%c0_11, %c0_12] : memref<1x256xf32, #tpu.memory_space<vmem>>, vector<1x256xf32>
    %12 = vector.broadcast %11 : vector<1x256xf32> to vector<2x256xf32>
    %13 = arith.addf %10, %12 : vector<2x256xf32>
    %cst_13 = arith.constant 0.000000e+00 : f32
    %14 = vector.broadcast %cst_13 : f32 to vector<2x256xf32>
    %15 = arith.maximumf %13, %14 : vector<2x256xf32>
    %c0_14 = arith.constant 0 : index
    %c0_15 = arith.constant 0 : index
    %16 = vector.load %arg3[%c0_14, %c0_15] : memref<2x32xbf16, #tpu.memory_space<vmem>>, vector<2x32xbf16>
    %c0_16 = arith.constant 0 : index
    %c0_17 = arith.constant 0 : index
    %17 = vector.load %arg8[%c0_16, %c0_17] : memref<32x256xbf16, #tpu.memory_space<vmem>>, vector<32x256xbf16>
    %cst_18 = arith.constant dense<0.000000e+00> : vector<2x256xf32>
    %18 = tpu.matmul %16, %17, %cst_18 {dimension_numbers = #tpu.dot_dimension_numbers<[1], [0], [0], [1], [0, 0, 1, 1], [], []>} : vector<2x32xbf16>, vector<32x256xbf16>, vector<2x256xf32> -> vector<2x256xf32>
    %c0_19 = arith.constant 0 : index
    %c0_20 = arith.constant 0 : index
    %19 = vector.load %arg9[%c0_19, %c0_20] : memref<1x256xf32, #tpu.memory_space<vmem>>, vector<1x256xf32>
    %20 = vector.broadcast %19 : vector<1x256xf32> to vector<2x256xf32>
    %21 = arith.addf %18, %20 : vector<2x256xf32>
    %cst_21 = arith.constant 0.000000e+00 : f32
    %22 = vector.broadcast %cst_21 : f32 to vector<2x256xf32>
    %23 = arith.maximumf %21, %22 : vector<2x256xf32>
    %24 = arith.truncf %7 : vector<2x256xf32> to vector<2x256xbf16>
    %25 = arith.truncf %15 : vector<2x256xf32> to vector<2x256xbf16>
    %26 = arith.truncf %23 : vector<2x256xf32> to vector<2x256xbf16>
    %c0_22 = arith.constant 0 : index
    %c0_23 = arith.constant 0 : index
    %27 = vector.load %arg10[%c0_22, %c0_23] : memref<768x128xbf16, #tpu.memory_space<vmem>>, vector<256x128xbf16>
    %cst_24 = arith.constant dense<0.000000e+00> : vector<2x128xf32>
    %28 = tpu.matmul %24, %27, %cst_24 {dimension_numbers = #tpu.dot_dimension_numbers<[1], [0], [0], [1], [0, 0, 1, 1], [], []>} : vector<2x256xbf16>, vector<256x128xbf16>, vector<2x128xf32> -> vector<2x128xf32>
    %c256 = arith.constant 256 : index
    %c0_25 = arith.constant 0 : index
    %29 = vector.load %arg10[%c256, %c0_25] : memref<768x128xbf16, #tpu.memory_space<vmem>>, vector<256x128xbf16>
    %cst_26 = arith.constant dense<0.000000e+00> : vector<2x128xf32>
    %30 = tpu.matmul %25, %29, %cst_26 {dimension_numbers = #tpu.dot_dimension_numbers<[1], [0], [0], [1], [0, 0, 1, 1], [], []>} : vector<2x256xbf16>, vector<256x128xbf16>, vector<2x128xf32> -> vector<2x128xf32>
    %31 = arith.addf %28, %30 : vector<2x128xf32>
    %c512 = arith.constant 512 : index
    %c0_27 = arith.constant 0 : index
    %32 = vector.load %arg10[%c512, %c0_27] : memref<768x128xbf16, #tpu.memory_space<vmem>>, vector<256x128xbf16>
    %cst_28 = arith.constant dense<0.000000e+00> : vector<2x128xf32>
    %33 = tpu.matmul %26, %32, %cst_28 {dimension_numbers = #tpu.dot_dimension_numbers<[1], [0], [0], [1], [0, 0, 1, 1], [], []>} : vector<2x256xbf16>, vector<256x128xbf16>, vector<2x128xf32> -> vector<2x128xf32>
    %34 = arith.addf %31, %33 : vector<2x128xf32>
    %c0_29 = arith.constant 0 : index
    %c0_30 = arith.constant 0 : index
    %35 = vector.load %arg11[%c0_29, %c0_30] : memref<1x128xf32, #tpu.memory_space<vmem>>, vector<1x128xf32>
    %36 = vector.broadcast %35 : vector<1x128xf32> to vector<2x128xf32>
    %37 = arith.addf %34, %36 : vector<2x128xf32>
    %c0_31 = arith.constant 0 : index
    %c0_32 = arith.constant 0 : index
    %38 = vector.load %arg12[%c0_31, %c0_32] : memref<2x128xf32, #tpu.memory_space<vmem>>, vector<2x128xf32>
    tpu.vector_store %arg12[%c0_31, %c0_32], %37 {strides = array<i32>} : memref<2x128xf32, #tpu.memory_space<vmem>>, vector<2x128xf32>,
    return
  }
  func.func @transform_0(%arg0: i32) -> (i32, i32) {
    %c0_i32 = arith.constant 0 : i32
    %c0_i32_0 = arith.constant 0 : i32
    return %arg0, %c0_i32 : i32, i32
  }
  func.func @transform_1(%arg0: i32) -> (i32, i32) {
    %c0_i32 = arith.constant 0 : i32
    %c0_i32_0 = arith.constant 0 : i32
    return %arg0, %c0_i32 : i32, i32
  }
  func.func @transform_2(%arg0: i32) -> (i32, i32) {
    %c0_i32 = arith.constant 0 : i32
    %c0_i32_0 = arith.constant 0 : i32
    return %arg0, %c0_i32 : i32, i32
  }
  func.func @transform_3(%arg0: i32) -> (i32, i32) {
    %c0_i32 = arith.constant 0 : i32
    %c0_i32_0 = arith.constant 0 : i32
    %c0_i32_1 = arith.constant 0 : i32
    return %c0_i32, %c0_i32_0 : i32, i32
  }
  func.func @transform_4(%arg0: i32) -> (i32, i32) {
    %c0_i32 = arith.constant 0 : i32
    %c0_i32_0 = arith.constant 0 : i32
    %c0_i32_1 = arith.constant 0 : i32
    return %c0_i32, %c0_i32_0 : i32, i32
  }
  func.func @transform_5(%arg0: i32) -> (i32, i32) {
    %c0_i32 = arith.constant 0 : i32
    %c0_i32_0 = arith.constant 0 : i32
    %c0_i32_1 = arith.constant 0 : i32
    return %c0_i32, %c0_i32_0 : i32, i32
  }
  func.func @transform_6(%arg0: i32) -> (i32, i32) {
    %c0_i32 = arith.constant 0 : i32
    %c0_i32_0 = arith.constant 0 : i32
    %c0_i32_1 = arith.constant 0 : i32
    return %c0_i32, %c0_i32_0 : i32, i32
  }
  func.func @transform_7(%arg0: i32) -> (i32, i32) {
    %c0_i32 = arith.constant 0 : i32
    %c0_i32_0 = arith.constant 0 : i32
    %c0_i32_1 = arith.constant 0 : i32
    return %c0_i32, %c0_i32_0 : i32, i32
  }
  func.func @transform_8(%arg0: i32) -> (i32, i32) {
    %c0_i32 = arith.constant 0 : i32
    %c0_i32_0 = arith.constant 0 : i32
    %c0_i32_1 = arith.constant 0 : i32
    return %c0_i32, %c0_i32_0 : i32, i32
  }
  func.func @transform_9(%arg0: i32) -> (i32, i32) {
    %c0_i32 = arith.constant 0 : i32
    %c0_i32_0 = arith.constant 0 : i32
    %c0_i32_1 = arith.constant 0 : i32
    return %c0_i32, %c0_i32_0 : i32, i32
  }
  func.func @transform_10(%arg0: i32) -> (i32, i32) {
    %c0_i32 = arith.constant 0 : i32
    %c0_i32_0 = arith.constant 0 : i32
    %c0_i32_1 = arith.constant 0 : i32
    return %c0_i32, %c0_i32_0 : i32, i32
  }
  func.func @transform_11(%arg0: i32) -> (i32, i32) {
    %c0_i32 = arith.constant 0 : i32
    %c0_i32_0 = arith.constant 0 : i32
    return %arg0, %c0_i32 : i32, i32
  }
}

</mosaic_0001>

<llo_original>
// kernel: tpu_custom_call.1
$region0: #{tpu_custom_call.1}
  #allocation0 [shape = 'u32[]', space=smem, size = 0x4, offset = 0x4, fixed_abs, tag = 'smem constant byte address 0x4 - core index']
  #allocation1 [shape = 'u32[144,128]{1,0:T(1,128)}', space=vmem, size = 0x12000, scoped, tag = 'internal scratch']
  %s0 = inlined_call_operand.hbm [shape: bf16[2,32], index: 0, kind: input, shape index: {}]
  %s1 = inlined_call_operand.vmem [shape: bf16[2,32], index: 1, kind: input, shape index: {}]
  %s2 = inlined_call_operand.hbm [shape: bf16[2,32], index: 2, kind: input, shape index: {}]
  %s3 = inlined_call_operand.hbm [shape: bf16[32,256], index: 3, kind: input, shape index: {}]
  %s4 = inlined_call_operand.vmem [shape: f32[1,256], index: 4, kind: input, shape index: {}]
  %s5 = inlined_call_operand.hbm [shape: bf16[32,256], index: 5, kind: input, shape index: {}]
  %s6 = inlined_call_operand.vmem [shape: f32[1,256], index: 6, kind: input, shape index: {}]
  %s7 = inlined_call_operand.hbm [shape: bf16[32,256], index: 7, kind: input, shape index: {}]
  %s8 = inlined_call_operand.vmem [shape: f32[1,256], index: 8, kind: input, shape index: {}]
  %s9 = inlined_call_operand.hbm [shape: bf16[768,128], index: 9, kind: input, shape index: {}]
  %s10 = inlined_call_operand.vmem [shape: f32[1,128], index: 10, kind: input, shape index: {}]
  %s11 = inlined_call_operand.hbm [shape: f32[2,128], index: 11, kind: output, shape index: {}]
  %s12 = sld [smem:[#allocation0]]
  $region78: #{tpu_custom_call.1} parent=0
    _
  %s14 = ssub.s32 1, %s12
  %s15 = scalar_select 0, %s14, %s12
  $region1: #{tpu_custom_call.1} parent=0
    #allocation2 [shape = 'u8[512]{0}', space=vmem, size = 0x400, scoped, tag = 'input window, operand 0, single buffered']
    #allocation3 [shape = 's32[1]{0}', space=sflag, size = 0x4, scoped, tag = 'scoped memory for tpu_custom_call.1']
    #allocation4 [shape = 's32[1]{0}', space=sflag, size = 0x4, scoped, tag = 'scoped memory for tpu_custom_call.1']
    #allocation5 [shape = 'u8[512]{0}', space=vmem, size = 0x400, scoped, tag = 'input window, operand 2, single buffered']
    #allocation6 [shape = 's32[1]{0}', space=sflag, size = 0x4, scoped, tag = 'scoped memory for tpu_custom_call.1']
    #allocation7 [shape = 'u8[16384]{0}', space=vmem, size = 0x4000, scoped, tag = 'input window, operand 3, single buffered']
    #allocation8 [shape = 'u8[16384]{0}', space=vmem, size = 0x4000, scoped, tag = 'input window, operand 5, single buffered']
    #allocation9 [shape = 's32[1]{0}', space=sflag, size = 0x4, scoped, tag = 'scoped memory for tpu_custom_call.1']
    #allocation10 [shape = 'u8[16384]{0}', space=vmem, size = 0x4000, scoped, tag = 'input window, operand 7, single buffered']
    #allocation11 [shape = 'u8[196608]{0}', space=vmem, size = 0x30000, scoped, tag = 'input window, operand 9, single buffered']
    #allocation12 [shape = 's32[1]{0}', space=sflag, size = 0x4, scoped, tag = 'scoped memory for tpu_custom_call.1']
    #allocation13 [shape = 'u8[1024]{0}', space=vmem, size = 0x400, scoped, tag = 'output window, operand 0, single buffered']
    %16 = vsyncpa [#allocation3], 0
    %17 = vsyncpa [#allocation6], 0
    %18 = vsyncpa [#allocation9], 0
    %19 = vsyncpa [#allocation12], 0
    %20 = vsyncpa [#allocation4], 0
    // Predicated region
    $region2: #{tpu_custom_call.1} parent=1 // pred_check
      _
    $region3: #{tpu_custom_call.1} parent=1 // pred_check_branch
      %22 = sbr.rel (0) target = $region5
    $region4: #{tpu_custom_call.1} parent=1 // pred_region
      %s24 = ssub.s32 16, 16
      %25 = vsyncadd [#allocation3], %s24
      %s27 = sshll.u32 [#allocation2], 4
      %s28 = int_to_ptr.vmem [resolvable:$true] %s27
      %30 = dma.hbm_to_vmem [thread:$0]  %s0, 16, %s28, [#allocation3]
    $region5: #{tpu_custom_call.1} parent=1 // pred_fallthru
      _
    // Predicated region
    $region6: #{tpu_custom_call.1} parent=1 // pred_check
      _
    $region7: #{tpu_custom_call.1} parent=1 // pred_check_branch
      %32 = sbr.rel (0) target = $region9
    $region8: #{tpu_custom_call.1} parent=1 // pred_region
      _
    $region9: #{tpu_custom_call.1} parent=1 // pred_fallthru
      _
    // Predicated region
    $region10: #{tpu_custom_call.1} parent=1 // pred_check
      _
    $region11: #{tpu_custom_call.1} parent=1 // pred_check_branch
      %34 = sbr.rel (0) target = $region13
    $region12: #{tpu_custom_call.1} parent=1 // pred_region
      %s36 = ssub.s32 16, 16
      %37 = vsyncadd [#allocation6], %s36
      %s39 = sshll.u32 [#allocation5], 4
      %s40 = int_to_ptr.vmem [resolvable:$true] %s39
      %42 = dma.hbm_to_vmem [thread:$0]  %s2, 16, %s40, [#allocation6]
    $region13: #{tpu_custom_call.1} parent=1 // pred_fallthru
      _
    // Predicated region
    $region14: #{tpu_custom_call.1} parent=1 // pred_check
      _
    $region15: #{tpu_custom_call.1} parent=1 // pred_check_branch
      %44 = sbr.rel (0) target = $region17
    $region16: #{tpu_custom_call.1} parent=1 // pred_region
      %s46 = ssub.s32 512, 512
      %47 = vsyncadd [#allocation6], %s46
      %s48 = sshll.u32 [#allocation7], 4
      %s49 = int_to_ptr.vmem [resolvable:$true] %s48
      %54 = dma.hbm_to_vmem [thread:$0]  %s3, 512, %s49, [#allocation6], 128, 128, 8
    $region17: #{tpu_custom_call.1} parent=1 // pred_fallthru
      _
    // Predicated region
    $region18: #{tpu_custom_call.1} parent=1 // pred_check
      _
    $region19: #{tpu_custom_call.1} parent=1 // pred_check_branch
      %56 = sbr.rel (0) target = $region21
    $region20: #{tpu_custom_call.1} parent=1 // pred_region
      _
    $region21: #{tpu_custom_call.1} parent=1 // pred_fallthru
      _
    // Predicated region
    $region22: #{tpu_custom_call.1} parent=1 // pred_check
      _
    $region23: #{tpu_custom_call.1} parent=1 // pred_check_branch
      %58 = sbr.rel (0) target = $region25
    $region24: #{tpu_custom_call.1} parent=1 // pred_region
      %s60 = ssub.s32 512, 512
      %61 = vsyncadd [#allocation9], %s60
      %s62 = sshll.u32 [#allocation8], 4
      %s63 = int_to_ptr.vmem [resolvable:$true] %s62
      %68 = dma.hbm_to_vmem [thread:$0]  %s5, 512, %s63, [#allocation9], 128, 128, 8
    $region25: #{tpu_custom_call.1} parent=1 // pred_fallthru
      _
    // Predicated region
    $region26: #{tpu_custom_call.1} parent=1 // pred_check
      _
    $region27: #{tpu_custom_call.1} parent=1 // pred_check_branch
      %70 = sbr.rel (0) target = $region29
    $region28: #{tpu_custom_call.1} parent=1 // pred_region
      _
    $region29: #{tpu_custom_call.1} parent=1 // pred_fallthru
      _
    // Predicated region
    $region30: #{tpu_custom_call.1} parent=1 // pred_check
      _
    $region31: #{tpu_custom_call.1} parent=1 // pred_check_branch
      %72 = sbr.rel (0) target = $region33
    $region32: #{tpu_custom_call.1} parent=1 // pred_region
      %s74 = ssub.s32 512, 512
      %75 = vsyncadd [#allocation9], %s74
      %s76 = sshll.u32 [#allocation10], 4
      %s77 = int_to_ptr.vmem [resolvable:$true] %s76
      %82 = dma.hbm_to_vmem [thread:$0]  %s7, 512, %s77, [#allocation9], 128, 128, 8
    $region33: #{tpu_custom_call.1} parent=1 // pred_fallthru
      _
    // Predicated region
    $region34: #{tpu_custom_call.1} parent=1 // pred_check
      _
    $region35: #{tpu_custom_call.1} parent=1 // pred_check_branch
      %84 = sbr.rel (0) target = $region37
    $region36: #{tpu_custom_call.1} parent=1 // pred_region
      _
    $region37: #{tpu_custom_call.1} parent=1 // pred_fallthru
      _
    // Predicated region
    $region38: #{tpu_custom_call.1} parent=1 // pred_check
      _
    $region39: #{tpu_custom_call.1} parent=1 // pred_check_branch
      %86 = sbr.rel (0) target = $region41
    $region40: #{tpu_custom_call.1} parent=1 // pred_region
      %s88 = ssub.s32 6144, 6144
      %89 = vsyncadd [#allocation12], %s88
      %s90 = sshll.u32 [#allocation11], 4
      %s91 = int_to_ptr.vmem [resolvable:$true] %s90
      %96 = dma.hbm_to_vmem [thread:$0]  %s9, 6144, %s91, [#allocation12], 64, 64, 4
    $region41: #{tpu_custom_call.1} parent=1 // pred_fallthru
      _
    // Predicated region
    $region42: #{tpu_custom_call.1} parent=1 // pred_check
      _
    $region43: #{tpu_custom_call.1} parent=1 // pred_check_branch
      %98 = sbr.rel (0) target = $region45
    $region44: #{tpu_custom_call.1} parent=1 // pred_region
      _
    $region45: #{tpu_custom_call.1} parent=1 // pred_fallthru
      _
    // Predicated region
    $region46: #{tpu_custom_call.1} parent=1 // pred_check
      _
    $region47: #{tpu_custom_call.1} parent=1 // pred_check_branch
      %100 = sbr.rel (0) target = $region49
    $region48: #{tpu_custom_call.1} parent=1 // pred_region
      %101 = dma.done [#allocation3], 16
    $region49: #{tpu_custom_call.1} parent=1 // pred_fallthru
      _
    // Predicated region
    $region50: #{tpu_custom_call.1} parent=1 // pred_check
      _
    $region51: #{tpu_custom_call.1} parent=1 // pred_check_branch
      %103 = sbr.rel (0) target = $region53
    $region52: #{tpu_custom_call.1} parent=1 // pred_region
      %104 = dma.done [#allocation6], 16
    $region53: #{tpu_custom_call.1} parent=1 // pred_fallthru
      _
    // Predicated region
    $region54: #{tpu_custom_call.1} parent=1 // pred_check
      _
    $region55: #{tpu_custom_call.1} parent=1 // pred_check_branch
      %106 = sbr.rel (0) target = $region57
    $region56: #{tpu_custom_call.1} parent=1 // pred_region
      %107 = dma.done [#allocation6], 512
    $region57: #{tpu_custom_call.1} parent=1 // pred_fallthru
      _
    // Predicated region
    $region58: #{tpu_custom_call.1} parent=1 // pred_check
      _
    $region59: #{tpu_custom_call.1} parent=1 // pred_check_branch
      %109 = sbr.rel (0) target = $region61
    $region60: #{tpu_custom_call.1} parent=1 // pred_region
      %110 = dma.done [#allocation9], 512
    $region61: #{tpu_custom_call.1} parent=1 // pred_fallthru
      _
    // Predicated region
    $region62: #{tpu_custom_call.1} parent=1 // pred_check
      _
    $region63: #{tpu_custom_call.1} parent=1 // pred_check_branch
      %112 = sbr.rel (0) target = $region65
    $region64: #{tpu_custom_call.1} parent=1 // pred_region
      %113 = dma.done [#allocation9], 512
    $region65: #{tpu_custom_call.1} parent=1 // pred_fallthru
      _
    // Predicated region
    $region66: #{tpu_custom_call.1} parent=1 // pred_check
      _
    $region67: #{tpu_custom_call.1} parent=1 // pred_check_branch
      %115 = sbr.rel (0) target = $region69
    $region68: #{tpu_custom_call.1} parent=1 // pred_region
      %116 = dma.done [#allocation12], 6144
    $region69: #{tpu_custom_call.1} parent=1 // pred_fallthru
      _
    %v118 = vld [vmem:[#allocation2] sm:$0x1]
    %v119 = vld [vmem:[#allocation7] sm:$0xff]
    %v120 = vld [vmem:[#allocation7 + $0x8] sm:$0xff]
    %v121 = vld [vmem:[#allocation7 + $0x10] sm:$0xff]
    %v122 = vld [vmem:[#allocation7 + $0x18] sm:$0xff]
    %v123 = vld [vmem:[%s4] sm:$0x3]
    %v125 = vlaneseq
    %v126 = vshrl.u32 %v125, 7
    %v127 = vsub.s32 0, %v126
    %v128 = vrot.slane %v123, %v127
    %v129 = vlaneseq
    %v130 = vshrl.u32 %v129, 7
    %v131 = vsub.s32 1, %v130
    %v132 = vrot.slane %v123, %v131
    %v139 = vunpack.c.l.b16 %v119
    %v140 = vunpack.c.h.b16 %v119
    %v141 = vunpack.c.l.b16 %v120
    %v142 = vunpack.c.h.b16 %v120
    %v143 = vunpack.c.l.b16 %v121
    %v144 = vunpack.c.h.b16 %v121
    %v145 = vunpack.c.l.b16 %v122
    %v146 = vunpack.c.h.b16 %v122
    %v147 = vpack.c.b16 %v141, %v139
    %v148 = vpack.c.b16 %v142, %v140
    %v149 = vpack.c.b16 %v145, %v143
    %v150 = vpack.c.b16 %v146, %v144
    %vm155 = vcmask 261120
    %v157 = vsel %vm155, %v118, 0
    %159 = vmatprep.subr.bf16.mxu0 %v148
    %160 = vmatpush1.bf16.msra.mxu0 %v147
    %161 = vmatprep.subr.bf16.mxu0 %v150
    %162 = vmatpush1.bf16.msra.mxu0 %v149
    %163 = vmatprep.subr.bf16.mxu0 0
    %164 = vmatpush1.bf16.msra.mxu0 0
    %165 = vmatprep.subr.bf16.mxu0 0
    %166 = vmatpush1.bf16.msra.mxu0 0
    %167 = vmatprep.subr.bf16.mxu0 0
    %168 = vmatpush1.bf16.msra.mxu0 0
    %169 = vmatprep.subr.bf16.mxu0 0
    %170 = vmatpush1.bf16.msra.mxu0 0
    %171 = vmatprep.subr.bf16.mxu0 0
    %172 = vmatpush1.bf16.msra.mxu0 0
    %173 = vmatprep.subr.bf16.mxu0 0
    %174 = vmatpush1.bf16.msra.mxu0 0
    %175 = vmatprep.subr.bf16.mxu0 0
    %176 = vmatpush1.bf16.msra.mxu0 0
    %177 = vmatprep.subr.bf16.mxu0 0
    %178 = vmatpush1.bf16.msra.mxu0 0
    %179 = vmatprep.subr.bf16.mxu0 0
    %180 = vmatpush1.bf16.msra.mxu0 0
    %181 = vmatprep.subr.bf16.mxu0 0
    %182 = vmatpush1.bf16.msra.mxu0 0
    %183 = vmatprep.subr.bf16.mxu0 0
    %184 = vmatpush1.bf16.msra.mxu0 0
    %185 = vmatprep.subr.bf16.mxu0 0
    %186 = vmatpush1.bf16.msra.mxu0 0
    %187 = vmatprep.subr.bf16.mxu0 0
    %188 = vmatpush1.bf16.msra.mxu0 0
    %189 = vmatprep.subr.bf16.mxu0 0
    %190 = vmatpush1.bf16.msra.mxu0 0
    %191 = vmatprep.mubr.bf16.mxu0 0
    %192 = vmatmul.mubr.bf16.gmra.mrb[0].mxu0 %v157
    %v193 = vpop.f32.mrb[0].mxu0
    %v194 = vadd.f32 %v128, %v193
    %v195 = vpop.f32.mrb[0].mxu0
    %v196 = vadd.f32 %v132, %v195
    %v197 = vpop.f32.mrb[0].mxu0
    %v198 = vpop.f32.mrb[0].mxu0
    %199 = vdwg.mxu0
    %v200 = vmax.f32 %v194, 0.0
    %v201 = vmax.f32 %v196, 0.0
    %v202 = vld [vmem:[%s1] sm:$0x1]
    %v203 = vld [vmem:[#allocation8] sm:$0xff]
    %v204 = vld [vmem:[#allocation8 + $0x8] sm:$0xff]
    %v205 = vld [vmem:[#allocation8 + $0x10] sm:$0xff]
    %v206 = vld [vmem:[#allocation8 + $0x18] sm:$0xff]
    %v207 = vld [vmem:[%s6] sm:$0x3]
    %v209 = vlaneseq
    %v210 = vshrl.u32 %v209, 7
    %v211 = vsub.s32 0, %v210
    %v212 = vrot.slane %v207, %v211
    %v213 = vlaneseq
    %v214 = vshrl.u32 %v213, 7
    %v215 = vsub.s32 1, %v214
    %v216 = vrot.slane %v207, %v215
    %v223 = vunpack.c.l.b16 %v203
    %v224 = vunpack.c.h.b16 %v203
    %v225 = vunpack.c.l.b16 %v204
    %v226 = vunpack.c.h.b16 %v204
    %v227 = vunpack.c.l.b16 %v205
    %v228 = vunpack.c.h.b16 %v205
    %v229 = vunpack.c.l.b16 %v206
    %v230 = vunpack.c.h.b16 %v206
    %v231 = vpack.c.b16 %v225, %v223
    %v232 = vpack.c.b16 %v226, %v224
    %v233 = vpack.c.b16 %v229, %v227
    %v234 = vpack.c.b16 %v230, %v228
    %v240 = vsel %vm155, %v202, 0
    %242 = vmatprep.subr.bf16.mxu0 %v232
    %243 = vmatpush1.bf16.msra.mxu0 %v231
    %244 = vmatprep.subr.bf16.mxu0 %v234
    %245 = vmatpush1.bf16.msra.mxu0 %v233
    %246 = vmatprep.subr.bf16.mxu0 0
    %247 = vmatpush1.bf16.msra.mxu0 0
    %248 = vmatprep.subr.bf16.mxu0 0
    %249 = vmatpush1.bf16.msra.mxu0 0
    %250 = vmatprep.subr.bf16.mxu0 0
    %251 = vmatpush1.bf16.msra.mxu0 0
    %252 = vmatprep.subr.bf16.mxu0 0
    %253 = vmatpush1.bf16.msra.mxu0 0
    %254 = vmatprep.subr.bf16.mxu0 0
    %255 = vmatpush1.bf16.msra.mxu0 0
    %256 = vmatprep.subr.bf16.mxu0 0
    %257 = vmatpush1.bf16.msra.mxu0 0
    %258 = vmatprep.subr.bf16.mxu0 0
    %259 = vmatpush1.bf16.msra.mxu0 0
    %260 = vmatprep.subr.bf16.mxu0 0
    %261 = vmatpush1.bf16.msra.mxu0 0
    %262 = vmatprep.subr.bf16.mxu0 0
    %263 = vmatpush1.bf16.msra.mxu0 0
    %264 = vmatprep.subr.bf16.mxu0 0
    %265 = vmatpush1.bf16.msra.mxu0 0
    %266 = vmatprep.subr.bf16.mxu0 0
    %267 = vmatpush1.bf16.msra.mxu0 0
    %268 = vmatprep.subr.bf16.mxu0 0
    %269 = vmatpush1.bf16.msra.mxu0 0
    %270 = vmatprep.subr.bf16.mxu0 0
    %271 = vmatpush1.bf16.msra.mxu0 0
    %272 = vmatprep.subr.bf16.mxu0 0
    %273 = vmatpush1.bf16.msra.mxu0 0
    %274 = vmatprep.mubr.bf16.mxu0 0
    %275 = vmatmul.mubr.bf16.gmra.mrb[0].mxu0 %v240
    %v276 = vpop.f32.mrb[0].mxu0
    %v277 = vadd.f32 %v212, %v276
    %v278 = vpop.f32.mrb[0].mxu0
    %v279 = vadd.f32 %v216, %v278
    %v280 = vpop.f32.mrb[0].mxu0
    %v281 = vpop.f32.mrb[0].mxu0
    %282 = vdwg.mxu0
    %v283 = vmax.f32 %v277, 0.0
    %v284 = vmax.f32 %v279, 0.0
    %v285 = vld [vmem:[#allocation5] sm:$0x1]
    %v286 = vld [vmem:[#allocation10] sm:$0xff]
    %v287 = vld [vmem:[#allocation10 + $0x8] sm:$0xff]
    %v288 = vld [vmem:[#allocation10 + $0x10] sm:$0xff]
    %v289 = vld [vmem:[#allocation10 + $0x18] sm:$0xff]
    %v290 = vld [vmem:[%s8] sm:$0x3]
    %v292 = vlaneseq
    %v293 = vshrl.u32 %v292, 7
    %v294 = vsub.s32 0, %v293
    %v295 = vrot.slane %v290, %v294
    %v296 = vlaneseq
    %v297 = vshrl.u32 %v296, 7
    %v298 = vsub.s32 1, %v297
    %v299 = vrot.slane %v290, %v298
    %v306 = vunpack.c.l.b16 %v286
    %v307 = vunpack.c.h.b16 %v286
    %v308 = vunpack.c.l.b16 %v287
    %v309 = vunpack.c.h.b16 %v287
    %v310 = vunpack.c.l.b16 %v288
    %v311 = vunpack.c.h.b16 %v288
    %v312 = vunpack.c.l.b16 %v289
    %v313 = vunpack.c.h.b16 %v289
    %v314 = vpack.c.b16 %v308, %v306
    %v315 = vpack.c.b16 %v309, %v307
    %v316 = vpack.c.b16 %v312, %v310
    %v317 = vpack.c.b16 %v313, %v311
    %v323 = vsel %vm155, %v285, 0
    %325 = vmatprep.subr.bf16.mxu0 %v315
    %326 = vmatpush1.bf16.msra.mxu0 %v314
    %327 = vmatprep.subr.bf16.mxu0 %v317
    %328 = vmatpush1.bf16.msra.mxu0 %v316
    %329 = vmatprep.subr.bf16.mxu0 0
    %330 = vmatpush1.bf16.msra.mxu0 0
    %331 = vmatprep.subr.bf16.mxu0 0
    %332 = vmatpush1.bf16.msra.mxu0 0
    %333 = vmatprep.subr.bf16.mxu0 0
    %334 = vmatpush1.bf16.msra.mxu0 0
    %335 = vmatprep.subr.bf16.mxu0 0
    %336 = vmatpush1.bf16.msra.mxu0 0
    %337 = vmatprep.subr.bf16.mxu0 0
    %338 = vmatpush1.bf16.msra.mxu0 0
    %339 = vmatprep.subr.bf16.mxu0 0
    %340 = vmatpush1.bf16.msra.mxu0 0
    %341 = vmatprep.subr.bf16.mxu0 0
    %342 = vmatpush1.bf16.msra.mxu0 0
    %343 = vmatprep.subr.bf16.mxu0 0
    %344 = vmatpush1.bf16.msra.mxu0 0
    %345 = vmatprep.subr.bf16.mxu0 0
    %346 = vmatpush1.bf16.msra.mxu0 0
    %347 = vmatprep.subr.bf16.mxu0 0
    %348 = vmatpush1.bf16.msra.mxu0 0
    %349 = vmatprep.subr.bf16.mxu0 0
    %350 = vmatpush1.bf16.msra.mxu0 0
    %351 = vmatprep.subr.bf16.mxu0 0
    %352 = vmatpush1.bf16.msra.mxu0 0
    %353 = vmatprep.subr.bf16.mxu0 0
    %354 = vmatpush1.bf16.msra.mxu0 0
    %355 = vmatprep.subr.bf16.mxu0 0
    %356 = vmatpush1.bf16.msra.mxu0 0
    %357 = vmatprep.mubr.bf16.mxu0 0
    %358 = vmatmul.mubr.bf16.gmra.mrb[0].mxu0 %v323
    %v359 = vpop.f32.mrb[0].mxu0
    %v360 = vadd.f32 %v295, %v359
    %v361 = vpop.f32.mrb[0].mxu0
    %v362 = vadd.f32 %v299, %v361
    %v363 = vpop.f32.mrb[0].mxu0
    %v364 = vpop.f32.mrb[0].mxu0
    %365 = vdwg.mxu0
    %v366 = vmax.f32 %v360, 0.0
    %v367 = vmax.f32 %v362, 0.0
    %v368 = vpack.c.bf16 %v200, %v200
    %v369 = vpack.c.bf16 %v201, %v201
    %v370 = vpack.c.bf16 %v283, %v283
    %v371 = vpack.c.bf16 %v284, %v284
    %v372 = vpack.c.bf16 %v366, %v366
    %v373 = vpack.c.bf16 %v367, %v367
    %v374 = vld [vmem:[#allocation11] sm:$0xf]
    %v375 = vld [vmem:[#allocation11 + $0x4] sm:$0xf]
    %v376 = vld [vmem:[#allocation11 + $0x8] sm:$0xf]
    %v377 = vld [vmem:[#allocation11 + $0xc] sm:$0xf]
    %v378 = vld [vmem:[#allocation11 + $0x10] sm:$0xf]
    %v379 = vld [vmem:[#allocation11 + $0x14] sm:$0xf]
    %v380 = vld [vmem:[#allocation11 + $0x18] sm:$0xf]
    %v381 = vld [vmem:[#allocation11 + $0x1c] sm:$0xf]
    %v382 = vld [vmem:[#allocation11 + $0x20] sm:$0xf]
    %v383 = vld [vmem:[#allocation11 + $0x24] sm:$0xf]
    %v384 = vld [vmem:[#allocation11 + $0x28] sm:$0xf]
    %v385 = vld [vmem:[#allocation11 + $0x2c] sm:$0xf]
    %v386 = vld [vmem:[#allocation11 + $0x30] sm:$0xf]
    %v387 = vld [vmem:[#allocation11 + $0x34] sm:$0xf]
    %v388 = vld [vmem:[#allocation11 + $0x38] sm:$0xf]
    %v389 = vld [vmem:[#allocation11 + $0x3c] sm:$0xf]
    %v390 = vld [vmem:[#allocation11 + $0x40] sm:$0xf]
    %v391 = vld [vmem:[#allocation11 + $0x44] sm:$0xf]
    %v392 = vld [vmem:[#allocation11 + $0x48] sm:$0xf]
    %v393 = vld [vmem:[#allocation11 + $0x4c] sm:$0xf]
    %v394 = vld [vmem:[#allocation11 + $0x50] sm:$0xf]
    %v395 = vld [vmem:[#allocation11 + $0x54] sm:$0xf]
    %v396 = vld [vmem:[#allocation11 + $0x58] sm:$0xf]
    %v397 = vld [vmem:[#allocation11 + $0x5c] sm:$0xf]
    %v398 = vld [vmem:[#allocation11 + $0x60] sm:$0xf]
    %v399 = vld [vmem:[#allocation11 + $0x64] sm:$0xf]
    %v400 = vld [vmem:[#allocation11 + $0x68] sm:$0xf]
    %v401 = vld [vmem:[#allocation11 + $0x6c] sm:$0xf]
    %v402 = vld [vmem:[#allocation11 + $0x70] sm:$0xf]
    %v403 = vld [vmem:[#allocation11 + $0x74] sm:$0xf]
    %v404 = vld [vmem:[#allocation11 + $0x78] sm:$0xf]
    %v405 = vld [vmem:[#allocation11 + $0x7c] sm:$0xf]
    %v406 = vld [vmem:[#allocation11 + $0x80] sm:$0xf]
    %v407 = vld [vmem:[#allocation11 + $0x84] sm:$0xf]
    %v408 = vld [vmem:[#allocation11 + $0x88] sm:$0xf]
    %v409 = vld [vmem:[#allocation11 + $0x8c] sm:$0xf]
    %v410 = vld [vmem:[#allocation11 + $0x90] sm:$0xf]
    %v411 = vld [vmem:[#allocation11 + $0x94] sm:$0xf]
    %v412 = vld [vmem:[#allocation11 + $0x98] sm:$0xf]
    %v413 = vld [vmem:[#allocation11 + $0x9c] sm:$0xf]
    %v414 = vld [vmem:[#allocation11 + $0xa0] sm:$0xf]
    %v415 = vld [vmem:[#allocation11 + $0xa4] sm:$0xf]
    %v416 = vld [vmem:[#allocation11 + $0xa8] sm:$0xf]
    %v417 = vld [vmem:[#allocation11 + $0xac] sm:$0xf]
    %v418 = vld [vmem:[#allocation11 + $0xb0] sm:$0xf]
    %v419 = vld [vmem:[#allocation11 + $0xb4] sm:$0xf]
    %v420 = vld [vmem:[#allocation11 + $0xb8] sm:$0xf]
    %v421 = vld [vmem:[#allocation11 + $0xbc] sm:$0xf]
    %v422 = vld [vmem:[#allocation11 + $0xc0] sm:$0xf]
    %v423 = vld [vmem:[#allocation11 + $0xc4] sm:$0xf]
    %v424 = vld [vmem:[#allocation11 + $0xc8] sm:$0xf]
    %v425 = vld [vmem:[#allocation11 + $0xcc] sm:$0xf]
    %v426 = vld [vmem:[#allocation11 + $0xd0] sm:$0xf]
    %v427 = vld [vmem:[#allocation11 + $0xd4] sm:$0xf]
    %v428 = vld [vmem:[#allocation11 + $0xd8] sm:$0xf]
    %v429 = vld [vmem:[#allocation11 + $0xdc] sm:$0xf]
    %v430 = vld [vmem:[#allocation11 + $0xe0] sm:$0xf]
    %v431 = vld [vmem:[#allocation11 + $0xe4] sm:$0xf]
    %v432 = vld [vmem:[#allocation11 + $0xe8] sm:$0xf]
    %v433 = vld [vmem:[#allocation11 + $0xec] sm:$0xf]
    %v434 = vld [vmem:[#allocation11 + $0xf0] sm:$0xf]
    %v435 = vld [vmem:[#allocation11 + $0xf4] sm:$0xf]
    %v436 = vld [vmem:[#allocation11 + $0xf8] sm:$0xf]
    %v437 = vld [vmem:[#allocation11 + $0xfc] sm:$0xf]
    %v470 = vunpack.c.l.b16 %v406
    %v471 = vunpack.c.l.b16 %v407
    %v472 = vunpack.c.l.b16 %v408
    %v473 = vunpack.c.l.b16 %v409
    %v474 = vunpack.c.l.b16 %v410
    %v475 = vunpack.c.l.b16 %v411
    %v476 = vunpack.c.l.b16 %v412
    %v477 = vunpack.c.l.b16 %v413
    %v478 = vunpack.c.l.b16 %v414
    %v479 = vunpack.c.l.b16 %v415
    %v480 = vunpack.c.l.b16 %v416
    %v481 = vunpack.c.l.b16 %v417
    %v482 = vunpack.c.l.b16 %v418
    %v483 = vunpack.c.l.b16 %v419
    %v484 = vunpack.c.l.b16 %v420
    %v485 = vunpack.c.l.b16 %v421
    %v486 = vunpack.c.l.b16 %v422
    %v487 = vunpack.c.l.b16 %v423
    %v488 = vunpack.c.l.b16 %v424
    %v489 = vunpack.c.l.b16 %v425
    %v490 = vunpack.c.l.b16 %v426
    %v491 = vunpack.c.l.b16 %v427
    %v492 = vunpack.c.l.b16 %v428
    %v493 = vunpack.c.l.b16 %v429
    %v494 = vunpack.c.l.b16 %v430
    %v495 = vunpack.c.l.b16 %v431
    %v496 = vunpack.c.l.b16 %v432
    %v497 = vunpack.c.l.b16 %v433
    %v498 = vunpack.c.l.b16 %v434
    %v499 = vunpack.c.l.b16 %v435
    %v500 = vunpack.c.l.b16 %v436
    %v501 = vunpack.c.l.b16 %v437
    %v502 = vpack.c.b16 %v471, %v470
    %v503 = vpack.c.b16 %v473, %v472
    %v504 = vpack.c.b16 %v475, %v474
    %v505 = vpack.c.b16 %v477, %v476
    %v506 = vpack.c.b16 %v479, %v478
    %v507 = vpack.c.b16 %v481, %v480
    %v508 = vpack.c.b16 %v483, %v482
    %v509 = vpack.c.b16 %v485, %v484
    %v510 = vpack.c.b16 %v487, %v486
    %v511 = vpack.c.b16 %v489, %v488
    %v512 = vpack.c.b16 %v491, %v490
    %v513 = vpack.c.b16 %v493, %v492
    %v514 = vpack.c.b16 %v495, %v494
    %v515 = vpack.c.b16 %v497, %v496
    %v516 = vpack.c.b16 %v499, %v498
    %v517 = vpack.c.b16 %v501, %v500
    %534 = vmatprep.subr.bf16.mxu0 0
    %535 = vmatpush1.bf16.msra.mxu0 %v502
    %536 = vmatprep.subr.bf16.mxu0 0
    %537 = vmatpush1.bf16.msra.mxu0 %v503
    %538 = vmatprep.subr.bf16.mxu0 0
    %539 = vmatpush1.bf16.msra.mxu0 %v504
    %540 = vmatprep.subr.bf16.mxu0 0
    %541 = vmatpush1.bf16.msra.mxu0 %v505
    %542 = vmatprep.subr.bf16.mxu0 0
    %543 = vmatpush1.bf16.msra.mxu0 %v506
    %544 = vmatprep.subr.bf16.mxu0 0
    %545 = vmatpush1.bf16.msra.mxu0 %v507
    %546 = vmatprep.subr.bf16.mxu0 0
    %547 = vmatpush1.bf16.msra.mxu0 %v508
    %548 = vmatprep.subr.bf16.mxu0 0
    %549 = vmatpush1.bf16.msra.mxu0 %v509
    %550 = vmatprep.subr.bf16.mxu0 0
    %551 = vmatpush1.bf16.msra.mxu0 %v510
    %552 = vmatprep.subr.bf16.mxu0 0
    %553 = vmatpush1.bf16.msra.mxu0 %v511
    %554 = vmatprep.subr.bf16.mxu0 0
    %555 = vmatpush1.bf16.msra.mxu0 %v512
    %556 = vmatprep.subr.bf16.mxu0 0
    %557 = vmatpush1.bf16.msra.mxu0 %v513
    %558 = vmatprep.subr.bf16.mxu0 0
    %559 = vmatpush1.bf16.msra.mxu0 %v514
    %560 = vmatprep.subr.bf16.mxu0 0
    %561 = vmatpush1.bf16.msra.mxu0 %v515
    %562 = vmatprep.subr.bf16.mxu0 0
    %563 = vmatpush1.bf16.msra.mxu0 %v516
    %564 = vmatprep.subr.bf16.mxu0 0
    %565 = vmatpush1.bf16.msra.mxu0 %v517
    %566 = vmatprep.mubr.bf16.mxu0 %v371
    %567 = vmatmul.mubr.bf16.gmra.mrb[0].mxu0 %v370
    %v568 = vpop.f32.mrb[0].mxu0
    %v569 = vadd.f32 0.0, %v568
    %v570 = vpop.f32.mrb[0].mxu0
    %v571 = vpop.f32.mrb[0].mxu0
    %v572 = vpop.f32.mrb[0].mxu0
    %573 = vdwg.mxu0
    %v606 = vunpack.c.l.b16 %v374
    %v607 = vunpack.c.l.b16 %v375
    %v608 = vunpack.c.l.b16 %v376
    %v609 = vunpack.c.l.b16 %v377
    %v610 = vunpack.c.l.b16 %v378
    %v611 = vunpack.c.l.b16 %v379
    %v612 = vunpack.c.l.b16 %v380
    %v613 = vunpack.c.l.b16 %v381
    %v614 = vunpack.c.l.b16 %v382
    %v615 = vunpack.c.l.b16 %v383
    %v616 = vunpack.c.l.b16 %v384
    %v617 = vunpack.c.l.b16 %v385
    %v618 = vunpack.c.l.b16 %v386
    %v619 = vunpack.c.l.b16 %v387
    %v620 = vunpack.c.l.b16 %v388
    %v621 = vunpack.c.l.b16 %v389
    %v622 = vunpack.c.l.b16 %v390
    %v623 = vunpack.c.l.b16 %v391
    %v624 = vunpack.c.l.b16 %v392
    %v625 = vunpack.c.l.b16 %v393
    %v626 = vunpack.c.l.b16 %v394
    %v627 = vunpack.c.l.b16 %v395
    %v628 = vunpack.c.l.b16 %v396
    %v629 = vunpack.c.l.b16 %v397
    %v630 = vunpack.c.l.b16 %v398
    %v631 = vunpack.c.l.b16 %v399
    %v632 = vunpack.c.l.b16 %v400
    %v633 = vunpack.c.l.b16 %v401
    %v634 = vunpack.c.l.b16 %v402
    %v635 = vunpack.c.l.b16 %v403
    %v636 = vunpack.c.l.b16 %v404
    %v637 = vunpack.c.l.b16 %v405
    %v638 = vpack.c.b16 %v607, %v606
    %v639 = vpack.c.b16 %v609, %v608
    %v640 = vpack.c.b16 %v611, %v610
    %v641 = vpack.c.b16 %v613, %v612
    %v642 = vpack.c.b16 %v615, %v614
    %v643 = vpack.c.b16 %v617, %v616
    %v644 = vpack.c.b16 %v619, %v618
    %v645 = vpack.c.b16 %v621, %v620
    %v646 = vpack.c.b16 %v623, %v622
    %v647 = vpack.c.b16 %v625, %v624
    %v648 = vpack.c.b16 %v627, %v626
    %v649 = vpack.c.b16 %v629, %v628
    %v650 = vpack.c.b16 %v631, %v630
    %v651 = vpack.c.b16 %v633, %v632
    %v652 = vpack.c.b16 %v635, %v634
    %v653 = vpack.c.b16 %v637, %v636
    %670 = vmatprep.subr.bf16.mxu0 0
    %671 = vmatpush1.bf16.msra.mxu0 %v638
    %672 = vmatprep.subr.bf16.mxu0 0
    %673 = vmatpush1.bf16.msra.mxu0 %v639
    %674 = vmatprep.subr.bf16.mxu0 0
    %675 = vmatpush1.bf16.msra.mxu0 %v640
    %676 = vmatprep.subr.bf16.mxu0 0
    %677 = vmatpush1.bf16.msra.mxu0 %v641
    %678 = vmatprep.subr.bf16.mxu0 0
    %679 = vmatpush1.bf16.msra.mxu0 %v642
    %680 = vmatprep.subr.bf16.mxu0 0
    %681 = vmatpush1.bf16.msra.mxu0 %v643
    %682 = vmatprep.subr.bf16.mxu0 0
    %683 = vmatpush1.bf16.msra.mxu0 %v644
    %684 = vmatprep.subr.bf16.mxu0 0
    %685 = vmatpush1.bf16.msra.mxu0 %v645
    %686 = vmatprep.subr.bf16.mxu0 0
    %687 = vmatpush1.bf16.msra.mxu0 %v646
    %688 = vmatprep.subr.bf16.mxu0 0
    %689 = vmatpush1.bf16.msra.mxu0 %v647
    %690 = vmatprep.subr.bf16.mxu0 0
    %691 = vmatpush1.bf16.msra.mxu0 %v648
    %692 = vmatprep.subr.bf16.mxu0 0
    %693 = vmatpush1.bf16.msra.mxu0 %v649
    %694 = vmatprep.subr.bf16.mxu0 0
    %695 = vmatpush1.bf16.msra.mxu0 %v650
    %696 = vmatprep.subr.bf16.mxu0 0
    %697 = vmatpush1.bf16.msra.mxu0 %v651
    %698 = vmatprep.subr.bf16.mxu0 0
    %699 = vmatpush1.bf16.msra.mxu0 %v652
    %700 = vmatprep.subr.bf16.mxu0 0
    %701 = vmatpush1.bf16.msra.mxu0 %v653
    %702 = vmatprep.mubr.bf16.mxu0 %v369
    %703 = vmatmul.mubr.bf16.gmra.mrb[0].mxu0 %v368
    %v704 = vpop.f32.mrb[0].mxu0
    %v705 = vadd.f32 %v569, %v704
    %v706 = vpop.f32.mrb[0].mxu0
    %v707 = vpop.f32.mrb[0].mxu0
    %v708 = vpop.f32.mrb[0].mxu0
    %709 = vdwg.mxu0
    %v710 = vld [vmem:[#allocation11 + $0x100] sm:$0xf]
    %v711 = vld [vmem:[#allocation11 + $0x104] sm:$0xf]
    %v712 = vld [vmem:[#allocation11 + $0x108] sm:$0xf]
    %v713 = vld [vmem:[#allocation11 + $0x10c] sm:$0xf]
    %v714 = vld [vmem:[#allocation11 + $0x110] sm:$0xf]
    %v715 = vld [vmem:[#allocation11 + $0x114] sm:$0xf]
    %v716 = vld [vmem:[#allocation11 + $0x118] sm:$0xf]
    %v717 = vld [vmem:[#allocation11 + $0x11c] sm:$0xf]
    %v718 = vld [vmem:[#allocation11 + $0x120] sm:$0xf]
    %v719 = vld [vmem:[#allocation11 + $0x124] sm:$0xf]
    %v720 = vld [vmem:[#allocation11 + $0x128] sm:$0xf]
    %v721 = vld [vmem:[#allocation11 + $0x12c] sm:$0xf]
    %v722 = vld [vmem:[#allocation11 + $0x130] sm:$0xf]
    %v723 = vld [vmem:[#allocation11 + $0x134] sm:$0xf]
    %v724 = vld [vmem:[#allocation11 + $0x138] sm:$0xf]
    %v725 = vld [vmem:[#allocation11 + $0x13c] sm:$0xf]
    %v726 = vld [vmem:[#allocation11 + $0x140] sm:$0xf]
    %v727 = vld [vmem:[#allocation11 + $0x144] sm:$0xf]
    %v728 = vld [vmem:[#allocation11 + $0x148] sm:$0xf]
    %v729 = vld [vmem:[#allocation11 + $0x14c] sm:$0xf]
    %v730 = vld [vmem:[#allocation11 + $0x150] sm:$0xf]
    %v731 = vld [vmem:[#allocation11 + $0x154] sm:$0xf]
    %v732 = vld [vmem:[#allocation11 + $0x158] sm:$0xf]
    %v733 = vld [vmem:[#allocation11 + $0x15c] sm:$0xf]
    %v734 = vld [vmem:[#allocation11 + $0x160] sm:$0xf]
    %v735 = vld [vmem:[#allocation11 + $0x164] sm:$0xf]
    %v736 = vld [vmem:[#allocation11 + $0x168] sm:$0xf]
    %v737 = vld [vmem:[#allocation11 + $0x16c] sm:$0xf]
    %v738 = vld [vmem:[#allocation11 + $0x170] sm:$0xf]
    %v739 = vld [vmem:[#allocation11 + $0x174] sm:$0xf]
    %v740 = vld [vmem:[#allocation11 + $0x178] sm:$0xf]
    %v741 = vld [vmem:[#allocation11 + $0x17c] sm:$0xf]
    %v774 = vunpack.c.l.b16 %v710
    %v775 = vunpack.c.l.b16 %v711
    %v776 = vunpack.c.l.b16 %v712
    %v777 = vunpack.c.l.b16 %v713
    %v778 = vunpack.c.l.b16 %v714
    %v779 = vunpack.c.l.b16 %v715
    %v780 = vunpack.c.l.b16 %v716
    %v781 = vunpack.c.l.b16 %v717
    %v782 = vunpack.c.l.b16 %v718
    %v783 = vunpack.c.l.b16 %v719
    %v784 = vunpack.c.l.b16 %v720
    %v785 = vunpack.c.l.b16 %v721
    %v786 = vunpack.c.l.b16 %v722
    %v787 = vunpack.c.l.b16 %v723
    %v788 = vunpack.c.l.b16 %v724
    %v789 = vunpack.c.l.b16 %v725
    %v790 = vunpack.c.l.b16 %v726
    %v791 = vunpack.c.l.b16 %v727
    %v792 = vunpack.c.l.b16 %v728
    %v793 = vunpack.c.l.b16 %v729
    %v794 = vunpack.c.l.b16 %v730
    %v795 = vunpack.c.l.b16 %v731
    %v796 = vunpack.c.l.b16 %v732
    %v797 = vunpack.c.l.b16 %v733
    %v798 = vunpack.c.l.b16 %v734
    %v799 = vunpack.c.l.b16 %v735
    %v800 = vunpack.c.l.b16 %v736
    %v801 = vunpack.c.l.b16 %v737
    %v802 = vunpack.c.l.b16 %v738
    %v803 = vunpack.c.l.b16 %v739
    %v804 = vunpack.c.l.b16 %v740
    %v805 = vunpack.c.l.b16 %v741
    %v806 = vpack.c.b16 %v775, %v774
    %v807 = vpack.c.b16 %v777, %v776
    %v808 = vpack.c.b16 %v779, %v778
    %v809 = vpack.c.b16 %v781, %v780
    %v810 = vpack.c.b16 %v783, %v782
    %v811 = vpack.c.b16 %v785, %v784
    %v812 = vpack.c.b16 %v787, %v786
    %v813 = vpack.c.b16 %v789, %v788
    %v814 = vpack.c.b16 %v791, %v790
    %v815 = vpack.c.b16 %v793, %v792
    %v816 = vpack.c.b16 %v795, %v794
    %v817 = vpack.c.b16 %v797, %v796
    %v818 = vpack.c.b16 %v799, %v798
    %v819 = vpack.c.b16 %v801, %v800
    %v820 = vpack.c.b16 %v803, %v802
    %v821 = vpack.c.b16 %v805, %v804
    %838 = vmatprep.subr.bf16.mxu0 0
    %839 = vmatpush1.bf16.msra.mxu0 %v806
    %840 = vmatprep.subr.bf16.mxu0 0
    %841 = vmatpush1.bf16.msra.mxu0 %v807
    %842 = vmatprep.subr.bf16.mxu0 0
    %843 = vmatpush1.bf16.msra.mxu0 %v808
    %844 = vmatprep.subr.bf16.mxu0 0
    %845 = vmatpush1.bf16.msra.mxu0 %v809
    %846 = vmatprep.subr.bf16.mxu0 0
    %847 = vmatpush1.bf16.msra.mxu0 %v810
    %848 = vmatprep.subr.bf16.mxu0 0
    %849 = vmatpush1.bf16.msra.mxu0 %v811
    %850 = vmatprep.subr.bf16.mxu0 0
    %851 = vmatpush1.bf16.msra.mxu0 %v812
    %852 = vmatprep.subr.bf16.mxu0 0
    %853 = vmatpush1.bf16.msra.mxu0 %v813
    %854 = vmatprep.subr.bf16.mxu0 0
    %855 = vmatpush1.bf16.msra.mxu0 %v814
    %856 = vmatprep.subr.bf16.mxu0 0
    %857 = vmatpush1.bf16.msra.mxu0 %v815
    %858 = vmatprep.subr.bf16.mxu0 0
    %859 = vmatpush1.bf16.msra.mxu0 %v816
    %860 = vmatprep.subr.bf16.mxu0 0
    %861 = vmatpush1.bf16.msra.mxu0 %v817
    %862 = vmatprep.subr.bf16.mxu0 0
    %863 = vmatpush1.bf16.msra.mxu0 %v818
    %864 = vmatprep.subr.bf16.mxu0 0
    %865 = vmatpush1.bf16.msra.mxu0 %v819
    %866 = vmatprep.subr.bf16.mxu0 0
    %867 = vmatpush1.bf16.msra.mxu0 %v820
    %868 = vmatprep.subr.bf16.mxu0 0
    %869 = vmatpush1.bf16.msra.mxu0 %v821
    %870 = vmatprep.mubr.bf16.mxu0 %v373
    %871 = vmatmul.mubr.bf16.gmra.mrb[0].mxu0 %v372
    %v872 = vpop.f32.mrb[0].mxu0
    %v873 = vadd.f32 0.0, %v872
    %v874 = vpop.f32.mrb[0].mxu0
    %v875 = vpop.f32.mrb[0].mxu0
    %v876 = vpop.f32.mrb[0].mxu0
    %877 = vdwg.mxu0
    %v878 = vadd.f32 %v705, %v873
    %v879 = vld [vmem:[%s10] sm:$0x1]
    %v881 = vlaneseq
    %v882 = vshrl.u32 %v881, 7
    %v883 = vsub.s32 0, %v882
    %v884 = vrot.slane %v879, %v883
    %v886 = vadd.f32 %v878, %v884
    %887 = vst [vmem:[#allocation13] sm:$0x3] %v886
    // Predicated region
    $region70: #{tpu_custom_call.1} parent=1 // pred_check
      _
    $region71: #{tpu_custom_call.1} parent=1 // pred_check_branch
      %889 = sbr.rel (0) target = $region73
    $region72: #{tpu_custom_call.1} parent=1 // pred_region
      %s891 = ssub.s32 32, 32
      %892 = vsyncadd [#allocation4], %s891
      %s894 = sshll.u32 [#allocation13], 4
      %s895 = int_to_ptr.vmem [resolvable:$true] %s894
      %897 = dma.vmem_to_hbm [thread:$0]  %s895, 32, %s11, [#allocation4]
    $region73: #{tpu_custom_call.1} parent=1 // pred_fallthru
      _
    // Predicated region
    $region74: #{tpu_custom_call.1} parent=1 // pred_check
      _
    $region75: #{tpu_custom_call.1} parent=1 // pred_check_branch
      %899 = sbr.rel (0) target = $region77
    $region76: #{tpu_custom_call.1} parent=1 // pred_region
      %900 = dma.done [#allocation4], 32
    $region77: #{tpu_custom_call.1} parent=1 // pred_fallthru
      _
    %901 = vsyncpa [#allocation3], 1
    %902 = vsyncpa [#allocation6], 1
    %903 = vsyncpa [#allocation9], 1
    %904 = vsyncpa [#allocation12], 1
    %905 = vsyncpa [#allocation4], 1

</llo_original>
